<compile_context>
chip_gen: v7x
topology: tpu7x:2x2x1
jax: 0.10.0
libtpu: 0.0.40
codegen_flags: <defaults>
</compile_context>

<pallas_src>
import jax
import jax.numpy as jnp
from jax import lax
from jax.experimental import pallas as pl
from jax.experimental.pallas import tpu as pltpu


def _make_mlp_attention_kernel(num_mlps, batch_tile, matmul_dtype, n_valid, n_padded):
    """Fused kernel: MLP chain -> channel max -> softmax(N) -> residual ReLU."""

    def kernel(*refs):
        x_ref = refs[0]                       # (Bt, C, Np)  f32
        w_refs = refs[1:1 + num_mlps]         # (C_out_i, C_in_i)  matmul_dtype
        o_ref = refs[1 + num_mlps]            # (Bt, C, Np)  f32

        # Static unroll over the batch tile: each element is a plain (C, Np)
        # slab so every matmul is a supported 2-D x 2-D MXU op.  The whole
        # (Bt, C, Np) block arrived with one large DMA, which is what matters
        # for this memory-bound kernel.
        for b in range(batch_tile):
            xb = x_ref[b]                     # (C, Np) f32, lane-dense on Np

            # Bias-free 1x1 Conv1d chain: h <- W_i @ h over the channel dim.
            # Weight is LHS, contracting its C_in axis with h's channel axis,
            # so neither operand needs a physical transpose; bf16 operands
            # feed the MXU, accumulation stays f32.
            h = xb
            for w_ref in w_refs:
                h = lax.dot_general(
                    w_ref[...],
                    h.astype(matmul_dtype),
                    dimension_numbers=(((1,), (0,)), ((), ())),
                    preferred_element_type=jnp.float32,
                )                              # (C_out_i, Np) f32

            # torch.max(x_res, dim=1): reduce over channels (sublane axis).
            logits = jnp.max(h, axis=0, keepdims=True)            # (1, Np)

            # Keep padded lanes out of the softmax.
            if n_padded > n_valid:
                lane = lax.broadcasted_iota(jnp.int32, logits.shape, 1)
                logits = jnp.where(lane < n_valid, logits, -jnp.inf)

            # Numerically stabilized softmax over N; divide -> EUP reciprocal.
            logits = logits - jnp.max(logits, axis=-1, keepdims=True)
            e = jnp.exp(logits)                                    # (1, Np)
            inv = pl.reciprocal(jnp.sum(e, axis=-1, keepdims=True), approx=True)

            # relu(x + x*attn) == relu(x * (1 + attn)): the add touches only
            # Np elements instead of C*Np.
            scale = 1.0 + e * inv                                  # (1, Np)
            o_ref[b] = jnp.maximum(xb * scale, 0.0).astype(o_ref.dtype)

    return kernel


def _round_up(v, m):
    return -(-v // m) * m


def _vmem_limit_bytes():
    """Per-generation scoped-VMEM budget with headroom for compiler scratch."""
    try:
        phys = int(pltpu.get_tpu_info().vmem_capacity_bytes)
    except Exception:
        phys = 64 * 1024 * 1024              # conservative (v7x-sized) fallback
    # v7x (64 MiB)  -> 40 MiB;  v6e/v5e (128 MiB) -> 96 MiB.
    return int(max(32 * 1024 * 1024,
                   min(phys - 24 * 1024 * 1024, 96 * 1024 * 1024)))


def _pick_batch_tile(batch, c, n_padded, weight_bytes, vmem_budget):
    """Largest divisor of `batch` whose (Bt, C, Np) block fits the VMEM budget
    while still leaving >=4 grid steps (pipeline depth / v7x megacore)."""
    # Per batch element (f32): 2x double-buffered input + 2x output blocks
    # plus ~2x live intermediates during compute.
    per_elem = 6 * c * n_padded * 4
    usable = int(vmem_budget * 0.75) - 2 * weight_bytes
    bt_vmem = max(1, usable // per_elem)
    bt_pipe = max(1, batch // 4) if batch >= 4 else 1
    cap = max(1, min(bt_vmem, bt_pipe, batch))
    bt = 1
    for d in range(1, cap + 1):
        if batch % d == 0:
            bt = d
    return bt


def mlp_attention_forward(x, mlp_weights, *, matmul_dtype=jnp.bfloat16):
    """Fused Pallas forward of MLPAttentionLayer.

    Args:
      x: (B, C, N) input.
      mlp_weights: list of 1x1 Conv1d weights, each (C_out_i, C_in_i), chained
        so that C_in_0 == C and C_in_{i+1} == C_out_i.
      matmul_dtype: MXU operand dtype (bf16 -> full rate on v6e/v7x).

    Returns:
      (B, C, N) float32 output; same semantics as MLPAttentionLayer.forward.
    """
    B, C, N = x.shape
    x = jnp.asarray(x, jnp.float32)
    ws = [jnp.asarray(w, matmul_dtype) for w in mlp_weights]
    num_mlps = len(ws)

    # Pad N to a lane multiple so loads/stores are full-width (no vst.msk);
    # the padded lanes are masked out of the softmax inside the kernel.
    Np = _round_up(N, 128)
    if Np != N:
        x = jnp.pad(x, ((0, 0), (0, 0), (0, Np - N)))

    vmem_budget = _vmem_limit_bytes()
    weight_bytes = sum(int(w.size) * w.dtype.itemsize for w in ws)
    Bt = _pick_batch_tile(B, C, Np, weight_bytes, vmem_budget)

    in_specs = [pl.BlockSpec((Bt, C, Np), lambda g: (g, 0, 0))]
    for w in ws:
        in_specs.append(pl.BlockSpec(w.shape, lambda g: (0, 0)))

    out = pl.pallas_call(
        _make_mlp_attention_kernel(num_mlps, Bt, matmul_dtype, N, Np),
        out_shape=jax.ShapeDtypeStruct((B, C, Np), jnp.float32),
        grid=(B // Bt,),
        in_specs=in_specs,
        out_specs=pl.BlockSpec((Bt, C, Np), lambda g: (g, 0, 0)),
        compiler_params=pltpu.CompilerParams(
            dimension_semantics=("parallel",),
            vmem_limit_bytes=vmem_budget,
        ),
    )(x, *ws)

    if Np != N:
        out = out[:, :, :N]
    return out


# -----------------------------------------------------------------------------
# Pure-JAX reference (mirrors the PyTorch forward, all f32)
# -----------------------------------------------------------------------------
def mlp_attention_reference(x, mlp_weights):
    x = x.astype(jnp.float32)
    h = x
    for w in mlp_weights:
        h = jnp.einsum("oc,bcn->bon", w.astype(jnp.float32), h)
    logits = jnp.max(h, axis=1)                       # (B, N)
    attn = jax.nn.softmax(logits, axis=-1)            # (B, N)
    return jax.nn.relu(x + x * attn[:, None, :])


if __name__ == "__main__":
    # Small config consistent with the module: input is B x C x N and
    # channels = [64, 32, 16] -> two bias-free 1x1 Conv1d layers.
    batch = 2
    channels = [64, 32, 16]
    n_points = 256

    key = jax.random.PRNGKey(0)
    k_x, *k_w = jax.random.split(key, 1 + (len(channels) - 1))

    x = jax.random.normal(k_x, (batch, channels[0], n_points), jnp.float32)
    mlp_weights = [
        jax.random.normal(k_w[i], (channels[i + 1], channels[i]), jnp.float32)
        * (1.0 / jnp.sqrt(jnp.float32(channels[i])))
        for i in range(len(channels) - 1)
    ]

    out = mlp_attention_forward(x, mlp_weights)
    out = jax.block_until_ready(out)

    ref = mlp_attention_reference(x, mlp_weights)

    assert out.shape == (batch, channels[0], n_points)
    # Tolerance covers bf16 MXU operands and the EUP approximate reciprocal
    # (all other element-wise math is f32).
    if not bool(jnp.allclose(out, ref, atol=1e-2, rtol=1e-2)):
        raise AssertionError("Pallas MLPAttentionLayer output mismatch")

    print("KERNEL_OK")
</pallas_src>

<mosaic_0001>
module attributes {stable_mosaic.version = 11 : i64} {
  func.func @kernel(%arg0: i32, %arg1: memref<1x64x256xf32, #tpu.memory_space<vmem>>, %arg2: memref<32x64xbf16, #tpu.memory_space<vmem>>, %arg3: memref<16x32xbf16, #tpu.memory_space<vmem>>, %arg4: memref<1x64x256xf32, #tpu.memory_space<vmem>>) attributes {dimension_semantics = [#tpu.dimension_semantics<parallel>], iteration_bounds = array<i64: 2>, scalar_prefetch = 0 : i64, scratch_operands = 0 : i64, tpu.core_type = #tpu.core_type<tc>, window_params = [{transform_indices = @transform_0, window_bounds = array<i64: 1, 64, 256>}, {pipeline_mode = #tpu.pipeline_mode<synchronous>, transform_indices = @transform_1, window_bounds = array<i64: 32, 64>}, {pipeline_mode = #tpu.pipeline_mode<synchronous>, transform_indices = @transform_2, window_bounds = array<i64: 16, 32>}, {transform_indices = @transform_3, window_bounds = array<i64: 1, 64, 256>}]} {
    %c0 = arith.constant 0 : index
    %c0_0 = arith.constant 0 : index
    %c0_1 = arith.constant 0 : index
    %0 = vector.load %arg1[%c0, %c0_0, %c0_1] : memref<1x64x256xf32, #tpu.memory_space<vmem>>, vector<1x64x256xf32>
    %1 = vector.shape_cast %0 : vector<1x64x256xf32> to vector<64x256xf32>
    %c0_2 = arith.constant 0 : index
    %c0_3 = arith.constant 0 : index
    %2 = vector.load %arg2[%c0_2, %c0_3] : memref<32x64xbf16, #tpu.memory_space<vmem>>, vector<32x64xbf16>
    %3 = arith.truncf %1 : vector<64x256xf32> to vector<64x256xbf16>
    %cst = arith.constant dense<0.000000e+00> : vector<32x256xf32>
    %4 = tpu.matmul %2, %3, %cst {dimension_numbers = #tpu.dot_dimension_numbers<[1], [0], [0], [1], [0, 0, 1, 1], [], []>} : vector<32x64xbf16>, vector<64x256xbf16>, vector<32x256xf32> -> vector<32x256xf32>
    %c0_4 = arith.constant 0 : index
    %c0_5 = arith.constant 0 : index
    %5 = vector.load %arg3[%c0_4, %c0_5] : memref<16x32xbf16, #tpu.memory_space<vmem>>, vector<16x32xbf16>
    %6 = arith.truncf %4 : vector<32x256xf32> to vector<32x256xbf16>
    %cst_6 = arith.constant dense<0.000000e+00> : vector<16x256xf32>
    %7 = tpu.matmul %5, %6, %cst_6 {dimension_numbers = #tpu.dot_dimension_numbers<[1], [0], [0], [1], [0, 0, 1, 1], [], []>} : vector<16x32xbf16>, vector<32x256xbf16>, vector<16x256xf32> -> vector<16x256xf32>
    %cst_7 = arith.constant dense<0xFF800000> : vector<256xf32>
    %8 = vector.multi_reduction <maximumf>, %7, %cst_7 [0] : vector<16x256xf32> to vector<256xf32>
    %9 = vector.shape_cast %8 : vector<256xf32> to vector<1x256xf32>
    %cst_8 = arith.constant dense<0xFF800000> : vector<1xf32>
    %10 = vector.multi_reduction <maximumf>, %9, %cst_8 [1] : vector<1x256xf32> to vector<1xf32>
    %11 = vector.shape_cast %10 : vector<1xf32> to vector<1x1xf32>
    %12 = vector.broadcast %11 : vector<1x1xf32> to vector<1x256xf32>
    %13 = arith.subf %9, %12 : vector<1x256xf32>
    %14 = math.exp %13 : vector<1x256xf32>
    %cst_9 = arith.constant dense<0.000000e+00> : vector<1xf32>
    %15 = vector.multi_reduction <add>, %14, %cst_9 [1] : vector<1x256xf32> to vector<1xf32>
    %16 = vector.shape_cast %15 : vector<1xf32> to vector<1x1xf32>
    %17 = tpu.reciprocal %16 {approx = true} : vector<1x1xf32> -> vector<1x1xf32>
    %18 = vector.broadcast %17 : vector<1x1xf32> to vector<1x256xf32>
    %19 = arith.mulf %14, %18 : vector<1x256xf32>
    %cst_10 = arith.constant 1.000000e+00 : f32
    %20 = vector.broadcast %cst_10 : f32 to vector<1x256xf32>
    %21 = arith.addf %20, %19 : vector<1x256xf32>
    %22 = vector.broadcast %21 : vector<1x256xf32> to vector<64x256xf32>
    %23 = arith.mulf %1, %22 : vector<64x256xf32>
    %cst_11 = arith.constant 0.000000e+00 : f32
    %24 = vector.broadcast %cst_11 : f32 to vector<64x256xf32>
    %25 = arith.maximumf %23, %24 : vector<64x256xf32>
    %c0_12 = arith.constant 0 : index
    %c0_13 = arith.constant 0 : index
    %c0_14 = arith.constant 0 : index
    %26 = vector.load %arg4[%c0_12, %c0_13, %c0_14] : memref<1x64x256xf32, #tpu.memory_space<vmem>>, vector<1x64x256xf32>
    %27 = vector.shape_cast %26 : vector<1x64x256xf32> to vector<64x256xf32>
    %28 = vector.shape_cast %25 : vector<64x256xf32> to vector<1x64x256xf32>
    tpu.vector_store %arg4[%c0_12, %c0_13, %c0_14], %28 {strides = array<i32>} : memref<1x64x256xf32, #tpu.memory_space<vmem>>, vector<1x64x256xf32>,
    return
  }
  func.func @transform_0(%arg0: i32) -> (i32, i32, i32) {
    %c0_i32 = arith.constant 0 : i32
    %c0_i32_0 = arith.constant 0 : i32
    %c0_i32_1 = arith.constant 0 : i32
    return %arg0, %c0_i32, %c0_i32_0 : i32, i32, i32
  }
  func.func @transform_1(%arg0: i32) -> (i32, i32) {
    %c0_i32 = arith.constant 0 : i32
    %c0_i32_0 = arith.constant 0 : i32
    %c0_i32_1 = arith.constant 0 : i32
    return %c0_i32, %c0_i32_0 : i32, i32
  }
  func.func @transform_2(%arg0: i32) -> (i32, i32) {
    %c0_i32 = arith.constant 0 : i32
    %c0_i32_0 = arith.constant 0 : i32
    %c0_i32_1 = arith.constant 0 : i32
    return %c0_i32, %c0_i32_0 : i32, i32
  }
  func.func @transform_3(%arg0: i32) -> (i32, i32, i32) {
    %c0_i32 = arith.constant 0 : i32
    %c0_i32_0 = arith.constant 0 : i32
    %c0_i32_1 = arith.constant 0 : i32
    return %arg0, %c0_i32, %c0_i32_0 : i32, i32, i32
  }
}

</mosaic_0001>

<llo_original>
// kernel: tpu_custom_call.1
$region0: #{tpu_custom_call.1}
  #allocation0 [shape = 'u32[]', space=smem, size = 0x4, offset = 0x4, fixed_abs, tag = 'smem constant byte address 0x4 - core index']
  #allocation1 [shape = 'u32[144,128]{1,0:T(1,128)}', space=vmem, size = 0x12000, scoped, tag = 'internal scratch']
  %s0 = inlined_call_operand.hbm [shape: f32[2,64,256], index: 0, kind: input, shape index: {}]
  %s1 = inlined_call_operand.hbm [shape: bf16[32,64], index: 1, kind: input, shape index: {}]
  %s2 = inlined_call_operand.hbm [shape: bf16[16,32], index: 2, kind: input, shape index: {}]
  %s3 = inlined_call_operand.hbm [shape: f32[2,64,256], index: 3, kind: output, shape index: {}]
  %s4 = sld [smem:[#allocation0]]
  $region57: #{tpu_custom_call.1} parent=0
    _
  %s6 = ssub.s32 1, %s4
  %s7 = scalar_select 0, %s6, %s4
  $region1: #{tpu_custom_call.1} parent=0
    #allocation2 [shape = 'u8[131072]{0}', space=vmem, size = 0x20000, scoped, tag = 'input window, operand 0']
    #allocation3 [shape = 's32[2]{0}', space=sflag, size = 0x8, scoped, tag = 'scoped memory for tpu_custom_call.1']
    #allocation4 [shape = 's32[2]{0}', space=sflag, size = 0x8, scoped, tag = 'scoped memory for tpu_custom_call.1']
    #allocation5 [shape = 'u8[8192]{0}', space=vmem, size = 0x2000, scoped, tag = 'input window, operand 1, single buffered']
    #allocation6 [shape = 's32[1]{0}', space=sflag, size = 0x4, scoped, tag = 'scoped memory for tpu_custom_call.1']
    #allocation7 [shape = 'u8[4096]{0}', space=vmem, size = 0x1000, scoped, tag = 'input window, operand 2, single buffered']
    #allocation8 [shape = 'u8[131072]{0}', space=vmem, size = 0x20000, scoped, tag = 'output window, operand 0']
    %8 = vsyncpa [#allocation3], 0
    %s9 = scalar_lea.sflag [#allocation3], 1
    %10 = vsyncpa %s9, 0
    %11 = vsyncpa [#allocation6], 0
    %12 = vsyncpa [#allocation4], 0
    %s13 = scalar_lea.sflag [#allocation4], 1
    %14 = vsyncpa %s13, 0
    loop: start=0, step=1, limit=4
    $region2: #{tpu_custom_call.1} parent=1 // loop_pre_header
      _
    $region3: #{tpu_custom_call.1} parent=1 // loop_header
      %s16 = sphi 0, %s20
      %p17 = scmp.ge.s32.totalorder %s16, 4
      %s26 = sphi 0, %s28
      %s29 = sphi 0, %s26
      %s30 = sphi 0, %s29
      %s46 = sphi 0, %s30
      %s50 = sphi 0, %s50
      %s52 = sphi 0, %s50
      %s53 = sphi 0, %s52
      %s67 = sphi 0, %s53
      %s71 = sphi 0, %s71
      %s73 = sphi 0, %s71
      %s74 = sphi 0, %s73
      %s88 = sphi 0, %s74
      %s94 = sphi 0, %s96
      %s97 = sphi 0, %s94
      %s98 = sphi 0, %s97
      %s114 = sphi 0, %s98
    $region4: #{tpu_custom_call.1} parent=1 // loop_header_branch
      %19 = sbr.rel (%p17) target = $region8
    $region5: #{tpu_custom_call.1} parent=1 // loop_body
      %s21 = ssub.s32 %s16, 1
      %s22 = ssub.s32 %s16, 2
      %s23 = sadd.s32 %s16, 1
      %s24 = ssub.s32 %s16, %s23
      %p25 = scmp.eq.s32.totalorder %s24, 0
      %s27 = sadd.s32 %s26, 1
      %s28 = scalar_select %p25, %s26, %s27
      %p31 = pneg %p25
      %p32 = scmp.eq.s32.totalorder %s16, 1
      %p33 = por %p31, %p32
      %p34 = scmp.ne.s32.totalorder %s26, %s29
      %p35 = scmp.eq.s32.totalorder %s16, 0
      %p36 = por %p34, %p35
      %p37 = scmp.ne.s32.totalorder %s26, %s29
      %p38 = scmp.eq.s32.totalorder %s21, 1
      %p39 = por %p37, %p38
      %p40 = scmp.ne.s32.totalorder %s29, %s30
      %p41 = scmp.eq.s32.totalorder %s21, 0
      %p42 = por %p40, %p41
      %p43 = scmp.ne.s32.totalorder %s29, %s30
      %p44 = scmp.eq.s32.totalorder %s22, 1
      %p45 = por %p43, %p44
      %p47 = scmp.ne.s32.totalorder %s30, %s46
      %p48 = scmp.eq.s32.totalorder %s22, 0
      %p49 = por %p47, %p48
      %s51 = sadd.s32 %s50, 1
      %p54 = scmp.eq.s32.totalorder %s16, 1
      %p55 = scmp.ne.s32.totalorder %s50, %s52
      %p56 = scmp.eq.s32.totalorder %s16, 0
      %p57 = por %p55, %p56
      %p58 = scmp.ne.s32.totalorder %s50, %s52
      %p59 = scmp.eq.s32.totalorder %s21, 1
      %p60 = por %p58, %p59
      %p61 = scmp.ne.s32.totalorder %s52, %s53
      %p62 = scmp.eq.s32.totalorder %s21, 0
      %p63 = por %p61, %p62
      %p64 = scmp.ne.s32.totalorder %s52, %s53
      %p65 = scmp.eq.s32.totalorder %s22, 1
      %p66 = por %p64, %p65
      %p68 = scmp.ne.s32.totalorder %s53, %s67
      %p69 = scmp.eq.s32.totalorder %s22, 0
      %p70 = por %p68, %p69
      %s72 = sadd.s32 %s71, 1
      %p75 = scmp.eq.s32.totalorder %s16, 1
      %p76 = scmp.ne.s32.totalorder %s71, %s73
      %p77 = scmp.eq.s32.totalorder %s16, 0
      %p78 = por %p76, %p77
      %p79 = scmp.ne.s32.totalorder %s71, %s73
      %p80 = scmp.eq.s32.totalorder %s21, 1
      %p81 = por %p79, %p80
      %p82 = scmp.ne.s32.totalorder %s73, %s74
      %p83 = scmp.eq.s32.totalorder %s21, 0
      %p84 = por %p82, %p83
      %p85 = scmp.ne.s32.totalorder %s73, %s74
      %p86 = scmp.eq.s32.totalorder %s22, 1
      %p87 = por %p85, %p86
      %p89 = scmp.ne.s32.totalorder %s74, %s88
      %p90 = scmp.eq.s32.totalorder %s22, 0
      %p91 = por %p89, %p90
      %s92 = ssub.s32 %s16, %s23
      %p93 = scmp.eq.s32.totalorder %s92, 0
      %s95 = sadd.s32 %s94, 1
      %s96 = scalar_select %p93, %s94, %s95
      %p99 = pneg %p93
      %p100 = scmp.eq.s32.totalorder %s16, 1
      %p101 = por %p99, %p100
      %p102 = scmp.ne.s32.totalorder %s94, %s97
      %p103 = scmp.eq.s32.totalorder %s16, 0
      %p104 = por %p102, %p103
      %p105 = scmp.ne.s32.totalorder %s94, %s97
      %p106 = scmp.eq.s32.totalorder %s21, 1
      %p107 = por %p105, %p106
      %p108 = scmp.ne.s32.totalorder %s97, %s98
      %p109 = scmp.eq.s32.totalorder %s21, 0
      %p110 = por %p108, %p109
      %p111 = scmp.ne.s32.totalorder %s97, %s98
      %p112 = scmp.eq.s32.totalorder %s22, 1
      %p113 = por %p111, %p112
      %p115 = scmp.ne.s32.totalorder %s98, %s114
      %p116 = scmp.eq.s32.totalorder %s22, 0
      %p117 = por %p115, %p116
      %p118 = scmp.le.s32.totalorder 1, %s16
      %p119 = scmp.lt.s32.totalorder %s16, 3
      %p120 = pnand %p118, %p119
      %p121 = pneg %p120
      // Predicated region
      $region9: #{tpu_custom_call.1} parent=5 // pred_check
        _
      $region10: #{tpu_custom_call.1} parent=5 // pred_check_branch
        %123 = sbr.rel (%p120) target = $region12
      $region11: #{tpu_custom_call.1} parent=5 // pred_region
        %s124 = ssub.s32 %s16, 1
        // Predicated region
        $region13: #{tpu_custom_call.1} parent=11 // pred_check
          %p125 = pneg %p63
        $region14: #{tpu_custom_call.1} parent=11 // pred_check_branch
          %127 = sbr.rel (%p125) target = $region16
        $region15: #{tpu_custom_call.1} parent=11 // pred_region
          %s129 = ssub.s32 256, 256
          %130 = vsyncadd [#allocation6], %s129
          %s131 = sshll.u32 [#allocation5], 4
          %s132 = int_to_ptr.vmem [resolvable:$true] %s131
          %137 = dma.hbm_to_vmem [thread:$0]  %s1, 256, %s132, [#allocation6], 64, 64, 4
        $region16: #{tpu_custom_call.1} parent=11 // pred_fallthru
          _
        // Predicated region
        $region17: #{tpu_custom_call.1} parent=11 // pred_check
          %p138 = pneg %p84
        $region18: #{tpu_custom_call.1} parent=11 // pred_check_branch
          %140 = sbr.rel (%p138) target = $region20
        $region19: #{tpu_custom_call.1} parent=11 // pred_region
          %s142 = ssub.s32 128, 128
          %143 = vsyncadd [#allocation6], %s142
          %s144 = sshll.u32 [#allocation7], 4
          %s145 = int_to_ptr.vmem [resolvable:$true] %s144
          %150 = dma.hbm_to_vmem [thread:$0]  %s2, 128, %s145, [#allocation6], 64, 64, 4
        $region20: #{tpu_custom_call.1} parent=11 // pred_fallthru
          _
      $region12: #{tpu_custom_call.1} parent=5 // pred_fallthru
        _
      %p151 = scmp.lt.s32.totalorder %s16, 2
      // Predicated region
      $region21: #{tpu_custom_call.1} parent=5 // pred_check
        %p152 = pneg %p151
      $region22: #{tpu_custom_call.1} parent=5 // pred_check_branch
        %154 = sbr.rel (%p152) target = $region24
      $region23: #{tpu_custom_call.1} parent=5 // pred_region
        // Predicated region
        $region25: #{tpu_custom_call.1} parent=23 // pred_check
          %p155 = pneg %p36
        $region26: #{tpu_custom_call.1} parent=23 // pred_check_branch
          %157 = sbr.rel (%p155) target = $region28
        $region27: #{tpu_custom_call.1} parent=23 // pred_region
          %s158 = sand.u32 %s26, 1
          %s159 = scalar_lea.sflag [#allocation3], %s158
          %s160 = sand.u32 %s26, 1
          %s161 = smul.addr %s160, 128
          %s162 = scalar_lea.vmem [#allocation2], %s161
          %s164 = ssub.s32 2048, 2048
          %165 = vsyncadd %s159, %s164
          %s166 = smul.addr %s16, 16
          %s167 = smul.addr %s166, 128
          %s168 = scalar_lea.hbm %s0, %s167
          %s169 = sshll.u32 %s162, 4
          %s170 = int_to_ptr.vmem [resolvable:$true] %s169
          %175 = dma.hbm_to_vmem [thread:$0]  %s168, 2048, %s170, %s159, 256, 256, 16
        $region28: #{tpu_custom_call.1} parent=23 // pred_fallthru
          _
      $region24: #{tpu_custom_call.1} parent=5 // pred_fallthru
        _
      %p176 = scmp.le.s32.totalorder 1, %s16
      %p177 = scmp.lt.s32.totalorder %s16, 3
      %p178 = pnand %p176, %p177
      %p179 = pneg %p178
      // Predicated region
      $region29: #{tpu_custom_call.1} parent=5 // pred_check
        _
      $region30: #{tpu_custom_call.1} parent=5 // pred_check_branch
        %181 = sbr.rel (%p178) target = $region32
      $region31: #{tpu_custom_call.1} parent=5 // pred_region
        %s182 = ssub.s32 %s16, 1
        %s183 = sand.u32 %s29, 1
        %s184 = scalar_lea.sflag [#allocation3], %s183
        %s185 = sand.u32 %s29, 1
        %s186 = smul.addr %s185, 128
        %s187 = scalar_lea.vmem [#allocation2], %s186
        // Predicated region
        $region33: #{tpu_custom_call.1} parent=31 // pred_check
          %p188 = pneg %p42
        $region34: #{tpu_custom_call.1} parent=31 // pred_check_branch
          %190 = sbr.rel (%p188) target = $region36
        $region35: #{tpu_custom_call.1} parent=31 // pred_region
          %191 = dma.done %s184, 2048
        $region36: #{tpu_custom_call.1} parent=31 // pred_fallthru
          _
        // Predicated region
        $region37: #{tpu_custom_call.1} parent=31 // pred_check
          %p192 = pneg %p63
        $region38: #{tpu_custom_call.1} parent=31 // pred_check_branch
          %194 = sbr.rel (%p192) target = $region40
        $region39: #{tpu_custom_call.1} parent=31 // pred_region
          %195 = dma.done [#allocation6], 256
        $region40: #{tpu_custom_call.1} parent=31 // pred_fallthru
          _
        // Predicated region
        $region41: #{tpu_custom_call.1} parent=31 // pred_check
          %p196 = pneg %p84
        $region42: #{tpu_custom_call.1} parent=31 // pred_check_branch
          %198 = sbr.rel (%p196) target = $region44
        $region43: #{tpu_custom_call.1} parent=31 // pred_region
          %199 = dma.done [#allocation6], 128
        $region44: #{tpu_custom_call.1} parent=31 // pred_fallthru
          _
        %s200 = sand.u32 %s29, 1
        %s201 = scalar_lea.sflag [#allocation3], %s200
        %s202 = sand.u32 %s29, 1
        %s203 = smul.addr %s202, 128
        %s204 = scalar_lea.vmem [#allocation2], %s203
        %p205 = pneg %p42
        %p206 = pneg %p39
        %p207 = pneg %p63
        %p208 = pneg %p60
        %p209 = pneg %p84
        %p210 = pneg %p81
        %p211 = pneg %p110
        %p212 = pneg %p107
        %s213 = sand.u32 %s97, 1
        %s214 = scalar_lea.sflag [#allocation4], %s213
        %s215 = sand.u32 %s97, 1
        %s216 = smul.addr %s215, 128
        %s217 = scalar_lea.vmem [#allocation8], %s216
        %v219 = vld [vmem:[%s187] sm:$0xff]
        %v220 = vld [vmem:[%s187 + $0x8] sm:$0xff]
        %v221 = vld [vmem:[%s187 + $0x10] sm:$0xff]
        %v222 = vld [vmem:[%s187 + $0x18] sm:$0xff]
        %v223 = vld [vmem:[%s187 + $0x20] sm:$0xff]
        %v224 = vld [vmem:[%s187 + $0x28] sm:$0xff]
        %v225 = vld [vmem:[%s187 + $0x30] sm:$0xff]
        %v226 = vld [vmem:[%s187 + $0x38] sm:$0xff]
        %v227 = vld [vmem:[%s187 + $0x40] sm:$0xff]
        %v228 = vld [vmem:[%s187 + $0x48] sm:$0xff]
        %v229 = vld [vmem:[%s187 + $0x50] sm:$0xff]
        %v230 = vld [vmem:[%s187 + $0x58] sm:$0xff]
        %v231 = vld [vmem:[%s187 + $0x60] sm:$0xff]
        %v232 = vld [vmem:[%s187 + $0x68] sm:$0xff]
        %v233 = vld [vmem:[%s187 + $0x70] sm:$0xff]
        %v234 = vld [vmem:[%s187 + $0x78] sm:$0xff]
        %v235 = vld [vmem:[#allocation5] sm:$0xf]
        %v236 = vld [vmem:[#allocation5 + $0x4] sm:$0xf]
        %v237 = vld [vmem:[#allocation5 + $0x8] sm:$0xf]
        %v238 = vld [vmem:[#allocation5 + $0xc] sm:$0xf]
        %v239 = vpack.c.bf16 %v221, %v219
        %v240 = vpack.c.bf16 %v222, %v220
        %v241 = vpack.c.bf16 %v225, %v223
        %v242 = vpack.c.bf16 %v226, %v224
        %v243 = vpack.c.bf16 %v229, %v227
        %v244 = vpack.c.bf16 %v230, %v228
        %v245 = vpack.c.bf16 %v233, %v231
        %v246 = vpack.c.bf16 %v234, %v232
        %v251 = vunpack.c.l.b16 %v235
        %v252 = vunpack.c.l.b16 %v236
        %v253 = vunpack.c.l.b16 %v237
        %v254 = vunpack.c.l.b16 %v238
        %v255 = vpack.c.b16 %v252, %v251
        %v256 = vpack.c.b16 %v254, %v253
        %vm257 = vcmask 523264
        %v259 = vsel %vm257, %v255, 0
        %v262 = vsel %vm257, %v256, 0
        %264 = vmatprep.subr.bf16.mxu0 %v240
        %265 = vmatpush1.bf16.msra.mxu0 %v239
        %266 = vmatprep.subr.bf16.mxu0 %v242
        %267 = vmatpush1.bf16.msra.mxu0 %v241
        %268 = vmatprep.subr.bf16.mxu0 %v244
        %269 = vmatpush1.bf16.msra.mxu0 %v243
        %270 = vmatprep.subr.bf16.mxu0 %v246
        %271 = vmatpush1.bf16.msra.mxu0 %v245
        %272 = vmatprep.subr.bf16.mxu0 0
        %273 = vmatpush1.bf16.msra.mxu0 0
        %274 = vmatprep.subr.bf16.mxu0 0
        %275 = vmatpush1.bf16.msra.mxu0 0
        %276 = vmatprep.subr.bf16.mxu0 0
        %277 = vmatpush1.bf16.msra.mxu0 0
        %278 = vmatprep.subr.bf16.mxu0 0
        %279 = vmatpush1.bf16.msra.mxu0 0
        %280 = vmatprep.subr.bf16.mxu0 0
        %281 = vmatpush1.bf16.msra.mxu0 0
        %282 = vmatprep.subr.bf16.mxu0 0
        %283 = vmatpush1.bf16.msra.mxu0 0
        %284 = vmatprep.subr.bf16.mxu0 0
        %285 = vmatpush1.bf16.msra.mxu0 0
        %286 = vmatprep.subr.bf16.mxu0 0
        %287 = vmatpush1.bf16.msra.mxu0 0
        %288 = vmatprep.subr.bf16.mxu0 0
        %289 = vmatpush1.bf16.msra.mxu0 0
        %290 = vmatprep.subr.bf16.mxu0 0
        %291 = vmatpush1.bf16.msra.mxu0 0
        %292 = vmatprep.subr.bf16.mxu0 0
        %293 = vmatpush1.bf16.msra.mxu0 0
        %294 = vmatprep.subr.bf16.mxu0 0
        %295 = vmatpush1.bf16.msra.mxu0 0
        %296 = vmatprep.mubr.bf16.mxu0 0
        %297 = vmatmul.mubr.bf16.gmra.mrb[0].mxu0 %v259
        %v298 = vpop.f32.mrb[0].mxu0
        %v299 = vadd.f32 0.0, %v298
        %v300 = vpop.f32.mrb[0].mxu0
        %v301 = vadd.f32 0.0, %v300
        %v302 = vpop.f32.mrb[0].mxu0
        %v303 = vadd.f32 0.0, %v302
        %v304 = vpop.f32.mrb[0].mxu0
        %v305 = vadd.f32 0.0, %v304
        %306 = vmatprep.mubr.bf16.mxu0 0
        %307 = vmatmul.mubr.bf16.gmra.mrb[0].mxu0 %v262
        %v308 = vpop.f32.mrb[0].mxu0
        %v309 = vadd.f32 0.0, %v308
        %v310 = vpop.f32.mrb[0].mxu0
        %v311 = vadd.f32 0.0, %v310
        %v312 = vpop.f32.mrb[0].mxu0
        %v313 = vadd.f32 0.0, %v312
        %v314 = vpop.f32.mrb[0].mxu0
        %v315 = vadd.f32 0.0, %v314
        %316 = vdwg.mxu0
        %v317 = vld [vmem:[#allocation7] sm:$0xf]
        %v318 = vld [vmem:[#allocation7 + $0x4] sm:$0xf]
        %v319 = vpack.c.bf16 %v303, %v299
        %v320 = vpack.c.bf16 %v305, %v301
        %v321 = vpack.c.bf16 %v313, %v309
        %v322 = vpack.c.bf16 %v315, %v311
        %v325 = vunpack.c.l.b16 %v317
        %v326 = vunpack.c.l.b16 %v318
        %v327 = vpack.c.b16 %v326, %v325
        %vm328 = vcmask 261120
        %v330 = vsel %vm328, %v327, 0
        %332 = vmatprep.subr.bf16.mxu0 %v320
        %333 = vmatpush1.bf16.msra.mxu0 %v319
        %334 = vmatprep.subr.bf16.mxu0 %v322
        %335 = vmatpush1.bf16.msra.mxu0 %v321
        %336 = vmatprep.subr.bf16.mxu0 0
        %337 = vmatpush1.bf16.msra.mxu0 0
        %338 = vmatprep.subr.bf16.mxu0 0
        %339 = vmatpush1.bf16.msra.mxu0 0
        %340 = vmatprep.subr.bf16.mxu0 0
        %341 = vmatpush1.bf16.msra.mxu0 0
        %342 = vmatprep.subr.bf16.mxu0 0
        %343 = vmatpush1.bf16.msra.mxu0 0
        %344 = vmatprep.subr.bf16.mxu0 0
        %345 = vmatpush1.bf16.msra.mxu0 0
        %346 = vmatprep.subr.bf16.mxu0 0
        %347 = vmatpush1.bf16.msra.mxu0 0
        %348 = vmatprep.subr.bf16.mxu0 0
        %349 = vmatpush1.bf16.msra.mxu0 0
        %350 = vmatprep.subr.bf16.mxu0 0
        %351 = vmatpush1.bf16.msra.mxu0 0
        %352 = vmatprep.subr.bf16.mxu0 0
        %353 = vmatpush1.bf16.msra.mxu0 0
        %354 = vmatprep.subr.bf16.mxu0 0
        %355 = vmatpush1.bf16.msra.mxu0 0
        %356 = vmatprep.subr.bf16.mxu0 0
        %357 = vmatpush1.bf16.msra.mxu0 0
        %358 = vmatprep.subr.bf16.mxu0 0
        %359 = vmatpush1.bf16.msra.mxu0 0
        %360 = vmatprep.subr.bf16.mxu0 0
        %361 = vmatpush1.bf16.msra.mxu0 0
        %362 = vmatprep.subr.bf16.mxu0 0
        %363 = vmatpush1.bf16.msra.mxu0 0
        %364 = vmatprep.mubr.bf16.mxu0 0
        %365 = vmatmul.mubr.bf16.gmra.mrb[0].mxu0 %v330
        %v366 = vpop.f32.mrb[0].mxu0
        %v367 = vadd.f32 0.0, %v366
        %v368 = vpop.f32.mrb[0].mxu0
        %v369 = vadd.f32 0.0, %v368
        %v370 = vpop.f32.mrb[0].mxu0
        %v371 = vadd.f32 0.0, %v370
        %v372 = vpop.f32.mrb[0].mxu0
        %v373 = vadd.f32 0.0, %v372
        %374 = vdwg.mxu0
        %v375 = vmax.f32 %v367, %v371
        %v376 = vrot.slane %v375, 4
        %v377 = vmax.f32 %v375, %v376
        %v378 = vrot.slane %v377, 2
        %v379 = vmax.f32 %v377, %v378
        %v380 = vrot.slane %v379, 1
        %v381 = vmax.f32 %v379, %v380
        %v382 = vmax.f32 %v369, %v373
        %v383 = vrot.slane %v382, 4
        %v384 = vmax.f32 %v382, %v383
        %v385 = vrot.slane %v384, 2
        %v386 = vmax.f32 %v384, %v385
        %v387 = vrot.slane %v386, 1
        %v388 = vmax.f32 %v386, %v387
        %v389 = vmax.f32 %v381, %v388
        %390 = vmax.xlane.f32.xlu0 %v389
        %v391 = vpop.xlane.xlu0 %390
        %v392 = vsub.f32 %v381, %v391
        %v393 = vsub.f32 %v388, %v391
        %v394 = vmul.f32 %v392, 1.442695
        %v395 = vpow.pop %v394
        %v396 = vmul.f32 %v393, 1.442695
        %v397 = vpow.pop %v396
        %v398 = vadd.f32 %v395, %v397
        %399 = vadd.xlane.f32.xlu0 %v398
        %v400 = vpop.xlane.xlu0 %399
        %v401 = vrcp.pop %v400
        %v402 = vmul.f32 %v395, %v401
        %v403 = vmul.f32 %v397, %v401
        %v404 = vadd.f32 %v402, 1.0
        %v405 = vadd.f32 %v403, 1.0
        %v406 = vmul.f32 %v219, %v404
        %v407 = vmul.f32 %v220, %v405
        %v408 = vmul.f32 %v221, %v404
        %v409 = vmul.f32 %v222, %v405
        %v410 = vmul.f32 %v223, %v404
        %v411 = vmul.f32 %v224, %v405
        %v412 = vmul.f32 %v225, %v404
        %v413 = vmul.f32 %v226, %v405
        %v414 = vmul.f32 %v227, %v404
        %v415 = vmul.f32 %v228, %v405
        %v416 = vmul.f32 %v229, %v404
        %v417 = vmul.f32 %v230, %v405
        %v418 = vmul.f32 %v231, %v404
        %v419 = vmul.f32 %v232, %v405
        %v420 = vmul.f32 %v233, %v404
        %v421 = vmul.f32 %v234, %v405
        %v422 = vmax.f32 %v406, 0.0
        %v423 = vmax.f32 %v407, 0.0
        %v424 = vmax.f32 %v408, 0.0
        %v425 = vmax.f32 %v409, 0.0
        %v426 = vmax.f32 %v410, 0.0
        %v427 = vmax.f32 %v411, 0.0
        %v428 = vmax.f32 %v412, 0.0
        %v429 = vmax.f32 %v413, 0.0
        %v430 = vmax.f32 %v414, 0.0
        %v431 = vmax.f32 %v415, 0.0
        %v432 = vmax.f32 %v416, 0.0
        %v433 = vmax.f32 %v417, 0.0
        %v434 = vmax.f32 %v418, 0.0
        %v435 = vmax.f32 %v419, 0.0
        %v436 = vmax.f32 %v420, 0.0
        %v437 = vmax.f32 %v421, 0.0
        %438 = vst [vmem:[%s217] sm:$0xff] %v422
        %439 = vst [vmem:[%s217 + $0x8] sm:$0xff] %v423
        %440 = vst [vmem:[%s217 + $0x10] sm:$0xff] %v424
        %441 = vst [vmem:[%s217 + $0x18] sm:$0xff] %v425
        %442 = vst [vmem:[%s217 + $0x20] sm:$0xff] %v426
        %443 = vst [vmem:[%s217 + $0x28] sm:$0xff] %v427
        %444 = vst [vmem:[%s217 + $0x30] sm:$0xff] %v428
        %445 = vst [vmem:[%s217 + $0x38] sm:$0xff] %v429
        %446 = vst [vmem:[%s217 + $0x40] sm:$0xff] %v430
        %447 = vst [vmem:[%s217 + $0x48] sm:$0xff] %v431
        %448 = vst [vmem:[%s217 + $0x50] sm:$0xff] %v432
        %449 = vst [vmem:[%s217 + $0x58] sm:$0xff] %v433
        %450 = vst [vmem:[%s217 + $0x60] sm:$0xff] %v434
        %451 = vst [vmem:[%s217 + $0x68] sm:$0xff] %v435
        %452 = vst [vmem:[%s217 + $0x70] sm:$0xff] %v436
        %453 = vst [vmem:[%s217 + $0x78] sm:$0xff] %v437
        %s454 = sand.u32 %s97, 1
        %s455 = scalar_lea.sflag [#allocation4], %s454
        %s456 = sand.u32 %s97, 1
        %s457 = smul.addr %s456, 128
        %s458 = scalar_lea.vmem [#allocation8], %s457
        // Predicated region
        $region45: #{tpu_custom_call.1} parent=31 // pred_check
          %p459 = pneg %p107
        $region46: #{tpu_custom_call.1} parent=31 // pred_check_branch
          %461 = sbr.rel (%p459) target = $region48
        $region47: #{tpu_custom_call.1} parent=31 // pred_region
          %s463 = ssub.s32 2048, 2048
          %464 = vsyncadd %s455, %s463
          %s465 = smul.addr %s21, 16
          %s466 = smul.addr %s465, 128
          %s467 = scalar_lea.hbm %s3, %s466
          %s468 = sshll.u32 %s458, 4
          %s469 = int_to_ptr.vmem [resolvable:$true] %s468
          %474 = dma.vmem_to_hbm [thread:$0]  %s469, 2048, %s467, %s455, 256, 256, 16
        $region48: #{tpu_custom_call.1} parent=31 // pred_fallthru
          _
      $region32: #{tpu_custom_call.1} parent=5 // pred_fallthru
        _
      %p475 = scmp.le.s32.totalorder 2, %s16
      // Predicated region
      $region49: #{tpu_custom_call.1} parent=5 // pred_check
        %p476 = pneg %p475
      $region50: #{tpu_custom_call.1} parent=5 // pred_check_branch
        %478 = sbr.rel (%p476) target = $region52
      $region51: #{tpu_custom_call.1} parent=5 // pred_region
        %s479 = ssub.s32 %s16, 2
        // Predicated region
        $region53: #{tpu_custom_call.1} parent=51 // pred_check
          %p480 = pneg %p113
        $region54: #{tpu_custom_call.1} parent=51 // pred_check_branch
          %482 = sbr.rel (%p480) target = $region56
        $region55: #{tpu_custom_call.1} parent=51 // pred_region
          %s483 = sand.u32 %s98, 1
          %s484 = scalar_lea.sflag [#allocation4], %s483
          %s485 = sand.u32 %s98, 1
          %s486 = smul.addr %s485, 128
          %s487 = scalar_lea.vmem [#allocation8], %s486
          %488 = dma.done %s484, 2048
        $region56: #{tpu_custom_call.1} parent=51 // pred_fallthru
          _
      $region52: #{tpu_custom_call.1} parent=5 // pred_fallthru
        _
    $region6: #{tpu_custom_call.1} parent=1 // loop_footer
      %s20 = sadd.s32 1, %s16
    $region7: #{tpu_custom_call.1} parent=1 // loop_footer_branch
      %15 = sbr.rel target = $region3
    $region8: #{tpu_custom_call.1} parent=1 // loop_exit
      _
    %489 = vsyncpa [#allocation3], 1
    %s490 = scalar_lea.sflag [#allocation3], 1
    %491 = vsyncpa %s490, 1
    %492 = vsyncpa [#allocation6], 1
    %493 = vsyncpa [#allocation4], 1
    %s494 = scalar_lea.sflag [#allocation4], 1
    %495 = vsyncpa %s494, 1

</llo_original>
